<compile_context>
chip_gen: v6e
topology: v6e:2x2x1
jax: 0.10.0
libtpu: 0.0.40
codegen_flags: <defaults>
</compile_context>

<pallas_src>
import functools
import math

import jax
import jax.numpy as jnp
from jax.experimental import pallas as pl
from jax.experimental.pallas import tpu as pltpu


def _erf(x):
    # Abramowitz & Stegun 7.1.26 rational approximation, |err| <= 1.5e-7
    # (float32-level accuracy).  Uses only exp/mul/add/where -> VPU + EUP ops.
    p = 0.3275911
    a1, a2, a3, a4, a5 = (0.254829592, -0.284496736, 1.421413741,
                          -1.453152027, 1.061405429)
    ax = jnp.abs(x)
    t = 1.0 / (1.0 + p * ax)
    poly = ((((a5 * t + a4) * t + a3) * t + a2) * t + a1) * t
    r = 1.0 - poly * jnp.exp(-ax * ax)
    return jnp.where(x < 0.0, -r, r)


def _gelu_exact(x):
    # Matches torch.nn.GELU() default (exact, erf-based) to ~1e-7.
    return 0.5 * x * (1.0 + _erf(x * (1.0 / math.sqrt(2.0))))


# ---------------------------------------------------------------------------
# Kernels
# ---------------------------------------------------------------------------

def _stats_kernel(x_ref, w_ref, b_ref, sum_ref, sq_ref, *, matmul_dtype):
    """Accumulates per-channel sum / sum-of-squares of GELU(conv1x1(x)) for one
    image (grid axis 0), over spatial tiles (grid axis 1, reduction)."""
    s = pl.program_id(1)

    @pl.when(s == 0)
    def _():
        sum_ref[...] = jnp.zeros(sum_ref.shape, sum_ref.dtype)
        sq_ref[...] = jnp.zeros(sq_ref.shape, sq_ref.dtype)

    x = x_ref[...]                                                 # (Cin, Ts)
    h = jnp.dot(w_ref[...].astype(matmul_dtype), x.astype(matmul_dtype),
                preferred_element_type=jnp.float32) + b_ref[...]   # (Cout, Ts)
    h = _gelu_exact(h)
    sum_ref[...] += jnp.sum(h, axis=1, keepdims=True)
    sq_ref[...] += jnp.sum(h * h, axis=1, keepdims=True)


def _normalize_kernel(x_ref, w_ref, b_ref, scale_ref, shift_ref, o_ref,
                      *, residual, matmul_dtype):
    """y = GELU(W @ x + b) * scale + shift (+ x), one (image, spatial tile)."""
    x = x_ref[...]                                                 # (Cin, Ts)
    h = jnp.dot(w_ref[...].astype(matmul_dtype), x.astype(matmul_dtype),
                preferred_element_type=jnp.float32) + b_ref[...]   # (Cout, Ts)
    h = _gelu_exact(h)
    y = h * scale_ref[...] + shift_ref[...]                        # folded BN
    if residual:                                                   # static: indim == outdim
        y = y + x
    o_ref[...] = y.astype(o_ref.dtype)


# ---------------------------------------------------------------------------
# Wrapper
# ---------------------------------------------------------------------------

def _vmem_limit_bytes():
    """Per-generation VMEM budget (v5e/v6e: 128 MiB, v7x: 64 MiB physical)."""
    default = 64 << 20
    try:
        info = pltpu.get_tpu_info()
        cap = int(getattr(info, "vmem_capacity_bytes", default))
    except Exception:
        cap = default
    # leave headroom for compiler scratch / semaphores
    return min(cap * 3 // 4, 112 << 20)


def _pick_tile_s(hw, cin, cout, vmem_budget_bytes):
    """Largest multiple-of-128 divisor of hw whose double-buffered f32 blocks
    (x tile + out tile) fit in the VMEM budget; falls back to the full row."""
    resident = cin * cout * 4 + 4 * cout * 4           # weight + b/scale/shift
    budget = max(vmem_budget_bytes // 2 - resident, 1 << 20)
    t = (hw // 128) * 128
    while t >= 128:
        if hw % t == 0 and 2 * 4 * t * (cin + cout) <= budget:
            return t
        t -= 128
    return hw                                          # small / awkward spatial dims


def pointwise_conv(x_nchw, w, b, gamma, beta, *, eps=1e-5):
    """Forward of PointwiseConv.  x_nchw: (N, Cin, H, W) f32;
    w: (Cout, Cin) (squeezed 1x1 conv weight); b/gamma/beta: (Cout,)."""
    n, cin, hh, ww = x_nchw.shape
    cout = w.shape[0]
    residual = (cin == cout)
    hw = hh * ww

    x3 = x_nchw.reshape(n, cin, hw)                    # free reshape, stays NCHW
    b2 = b.reshape(cout, 1).astype(jnp.float32)

    vmem_limit = _vmem_limit_bytes()
    tile_s = _pick_tile_s(hw, cin, cout, vmem_limit)
    assert hw % tile_s == 0
    n_s = hw // tile_s

    # bf16 MXU path only when the matmul is big enough to be MXU-bound;
    # small-channel (mem-bound) cases stay in f32 for accuracy.
    matmul_dtype = jnp.bfloat16 if min(cin, cout) >= 256 else jnp.float32

    cparams = pltpu.CompilerParams(
        dimension_semantics=("parallel", "arbitrary"),
        vmem_limit_bytes=vmem_limit)

    # ---- pass 1: per-image, per-channel partial sums (tiny outputs only) ----
    stats_kernel = functools.partial(_stats_kernel, matmul_dtype=matmul_dtype)
    sums, sqs = pl.pallas_call(
        stats_kernel,
        out_shape=(jax.ShapeDtypeStruct((n, cout, 1), jnp.float32),
                   jax.ShapeDtypeStruct((n, cout, 1), jnp.float32)),
        grid_spec=pltpu.PrefetchScalarGridSpec(
            num_scalar_prefetch=0,
            grid=(n, n_s),                             # spatial = reduction axis (last)
            in_specs=[
                pl.BlockSpec((None, cin, tile_s), lambda ni, si: (ni, 0, si)),
                pl.BlockSpec((cout, cin), lambda ni, si: (0, 0)),
                pl.BlockSpec((cout, 1), lambda ni, si: (0, 0)),
            ],
            out_specs=(
                pl.BlockSpec((None, cout, 1), lambda ni, si: (ni, 0, 0)),
                pl.BlockSpec((None, cout, 1), lambda ni, si: (ni, 0, 0)),
            ),
        ),
        compiler_params=cparams,
    )(x3, w, b2)

    # ---- fold BN affine once (O(Cout) work, done outside the hot loop) ----
    m_total = float(n * hw)
    mean = jnp.sum(sums, axis=0) / m_total                         # (Cout, 1)
    var = jnp.maximum(jnp.sum(sqs, axis=0) / m_total - mean * mean, 0.0)
    # TODO(synk): E[h^2]-mean^2 can lose precision for very large batches; a
    # two-pass centered variance would be safer if that regime matters.
    inv_std = jax.lax.rsqrt(var + eps)
    scale = gamma.reshape(cout, 1) * inv_std
    shift = beta.reshape(cout, 1) - mean * scale

    # ---- pass 2: normalize & write (fully parallel grid, lane-dense output) ----
    norm_kernel = functools.partial(_normalize_kernel,
                                    residual=residual, matmul_dtype=matmul_dtype)
    out3 = pl.pallas_call(
        norm_kernel,
        out_shape=jax.ShapeDtypeStruct((n, cout, hw), jnp.float32),
        grid_spec=pltpu.PrefetchScalarGridSpec(
            num_scalar_prefetch=0,
            grid=(n, n_s),
            in_specs=[
                pl.BlockSpec((None, cin, tile_s), lambda ni, si: (ni, 0, si)),
                pl.BlockSpec((cout, cin), lambda ni, si: (0, 0)),
                pl.BlockSpec((cout, 1), lambda ni, si: (0, 0)),
                pl.BlockSpec((cout, 1), lambda ni, si: (0, 0)),
                pl.BlockSpec((cout, 1), lambda ni, si: (0, 0)),
            ],
            out_specs=pl.BlockSpec((None, cout, tile_s),
                                   lambda ni, si: (ni, 0, si)),
        ),
        compiler_params=pltpu.CompilerParams(
            dimension_semantics=("parallel", "parallel"),
            vmem_limit_bytes=vmem_limit),
    )(x3, w, b2, scale, shift)

    return out3.reshape(n, cout, hh, ww)               # free reshape back to NCHW


# ---------------------------------------------------------------------------
# Plain-JAX reference (matches the torch forward, train-mode BN)
# ---------------------------------------------------------------------------

def pointwise_conv_ref(x, w, b, gamma, beta, eps=1e-5):
    n, cin, hh, ww = x.shape
    cout = w.shape[0]
    h = jnp.einsum('nchw,oc->nohw', x, w) + b.reshape(1, cout, 1, 1)
    h = jax.nn.gelu(h, approximate=False)
    mean = h.mean(axis=(0, 2, 3), keepdims=True)
    var = h.var(axis=(0, 2, 3), keepdims=True)       # biased, like BN train mode
    y = ((h - mean) * jax.lax.rsqrt(var + eps) * gamma.reshape(1, cout, 1, 1)
         + beta.reshape(1, cout, 1, 1))
    if cin == cout:
        y = y + x
    return y


if __name__ == "__main__":
    key = jax.random.PRNGKey(0)
    k1, k2, k3 = jax.random.split(key, 3)

    N, Cin, H, W = 2, 4, 16, 16
    Cout = 4   # indim == outdim -> the residual branch of the module is exercised

    x = jax.random.normal(k1, (N, Cin, H, W), jnp.float32)

    # Conv2d(Cin, Cout, kernel_size=1): weight (Cout, Cin, 1, 1) squeezed, bias (Cout,)
    bound = 1.0 / math.sqrt(Cin)
    w = jax.random.uniform(k2, (Cout, Cin), jnp.float32, -bound, bound)
    b = jax.random.uniform(k3, (Cout,), jnp.float32, -bound, bound)
    # BatchNorm2d(Cout) default affine init
    gamma = jnp.ones((Cout,), jnp.float32)
    beta = jnp.zeros((Cout,), jnp.float32)

    out = jax.block_until_ready(pointwise_conv(x, w, b, gamma, beta))
    ref = pointwise_conv_ref(x, w, b, gamma, beta)

    assert out.shape == (N, Cout, H, W)
    max_err = float(jnp.max(jnp.abs(out - ref)))
    assert jnp.allclose(out, ref, rtol=2e-3, atol=2e-3), max_err
    print("KERNEL_OK")
</pallas_src>

<mosaic_0001>
module attributes {stable_mosaic.version = 11 : i64} {
  func.func @_stats_kernel(%arg0: i32, %arg1: i32, %arg2: memref<1x4x256xf32, #tpu.memory_space<vmem>>, %arg3: memref<4x4xf32, #tpu.memory_space<vmem>>, %arg4: memref<4x1xf32, #tpu.memory_space<vmem>>, %arg5: memref<1x4x1xf32, #tpu.memory_space<vmem>>, %arg6: memref<1x4x1xf32, #tpu.memory_space<vmem>>) attributes {dimension_semantics = [#tpu.dimension_semantics<parallel>, #tpu.dimension_semantics<arbitrary>], iteration_bounds = array<i64: 2, 1>, scalar_prefetch = 0 : i64, scratch_operands = 0 : i64, tpu.core_type = #tpu.core_type<tc>, window_params = [{transform_indices = @transform_0, window_bounds = array<i64: 1, 4, 256>}, {pipeline_mode = #tpu.pipeline_mode<synchronous>, transform_indices = @transform_1, window_bounds = array<i64: 4, 4>}, {pipeline_mode = #tpu.pipeline_mode<synchronous>, transform_indices = @transform_2, window_bounds = array<i64: 4, 1>}, {transform_indices = @transform_3, window_bounds = array<i64: 1, 4, 1>}, {transform_indices = @transform_4, window_bounds = array<i64: 1, 4, 1>}]} {
    %c0_i32 = arith.constant 0 : i32
    %0 = arith.cmpi eq, %arg1, %c0_i32 : i32
    %1 = arith.extui %0 : i1 to i32
    %c0_i32_0 = arith.constant 0 : i32
    %2 = arith.cmpi ne, %1, %c0_i32_0 : i32
    scf.if %2 {
      %cst_36 = arith.constant 0.000000e+00 : f32
      %67 = vector.broadcast %cst_36 : f32 to vector<4x1xf32>
      %c0_37 = arith.constant 0 : index
      %c0_38 = arith.constant 0 : index
      %c0_39 = arith.constant 0 : index
      %68 = vector.load %arg5[%c0_37, %c0_38, %c0_39] : memref<1x4x1xf32, #tpu.memory_space<vmem>>, vector<1x4x1xf32>
      %69 = vector.shape_cast %68 : vector<1x4x1xf32> to vector<4x1xf32>
      %70 = vector.shape_cast %67 : vector<4x1xf32> to vector<1x4x1xf32>
      tpu.vector_store %arg5[%c0_37, %c0_38, %c0_39], %70 {strides = array<i32>} : memref<1x4x1xf32, #tpu.memory_space<vmem>>, vector<1x4x1xf32>,
      %cst_40 = arith.constant 0.000000e+00 : f32
      %71 = vector.broadcast %cst_40 : f32 to vector<4x1xf32>
      %c0_41 = arith.constant 0 : index
      %c0_42 = arith.constant 0 : index
      %c0_43 = arith.constant 0 : index
      %72 = vector.load %arg6[%c0_41, %c0_42, %c0_43] : memref<1x4x1xf32, #tpu.memory_space<vmem>>, vector<1x4x1xf32>
      %73 = vector.shape_cast %72 : vector<1x4x1xf32> to vector<4x1xf32>
      %74 = vector.shape_cast %71 : vector<4x1xf32> to vector<1x4x1xf32>
      tpu.vector_store %arg6[%c0_41, %c0_42, %c0_43], %74 {strides = array<i32>} : memref<1x4x1xf32, #tpu.memory_space<vmem>>, vector<1x4x1xf32>,
    } else {
    }
    %c0 = arith.constant 0 : index
    %c0_1 = arith.constant 0 : index
    %c0_2 = arith.constant 0 : index
    %3 = vector.load %arg2[%c0, %c0_1, %c0_2] : memref<1x4x256xf32, #tpu.memory_space<vmem>>, vector<1x4x256xf32>
    %4 = vector.shape_cast %3 : vector<1x4x256xf32> to vector<4x256xf32>
    %c0_3 = arith.constant 0 : index
    %c0_4 = arith.constant 0 : index
    %5 = vector.load %arg3[%c0_3, %c0_4] : memref<4x4xf32, #tpu.memory_space<vmem>>, vector<4x4xf32>
    %cst = arith.constant dense<0.000000e+00> : vector<4x256xf32>
    %6 = tpu.matmul %5, %4, %cst {dimension_numbers = #tpu.dot_dimension_numbers<[1], [0], [0], [1], [0, 0, 1, 1], [], []>} : vector<4x4xf32>, vector<4x256xf32>, vector<4x256xf32> -> vector<4x256xf32>
    %c0_5 = arith.constant 0 : index
    %c0_6 = arith.constant 0 : index
    %7 = vector.load %arg4[%c0_5, %c0_6] : memref<4x1xf32, #tpu.memory_space<vmem>>, vector<4x1xf32>
    %8 = vector.broadcast %7 : vector<4x1xf32> to vector<4x256xf32>
    %9 = arith.addf %6, %8 : vector<4x256xf32>
    %cst_7 = arith.constant 5.000000e-01 : f32
    %10 = vector.broadcast %cst_7 : f32 to vector<4x256xf32>
    %11 = arith.mulf %10, %9 : vector<4x256xf32>
    %cst_8 = arith.constant 0.707106769 : f32
    %12 = vector.broadcast %cst_8 : f32 to vector<4x256xf32>
    %13 = arith.mulf %9, %12 : vector<4x256xf32>
    %14 = math.absf %13 : vector<4x256xf32>
    %cst_9 = arith.constant 0.327591091 : f32
    %15 = vector.broadcast %cst_9 : f32 to vector<4x256xf32>
    %16 = arith.mulf %15, %14 : vector<4x256xf32>
    %cst_10 = arith.constant 1.000000e+00 : f32
    %17 = vector.broadcast %cst_10 : f32 to vector<4x256xf32>
    %18 = arith.addf %17, %16 : vector<4x256xf32>
    %cst_11 = arith.constant 1.000000e+00 : f32
    %19 = vector.broadcast %cst_11 : f32 to vector<4x256xf32>
    %20 = arith.divf %19, %18 : vector<4x256xf32>
    %cst_12 = arith.constant 1.06140542 : f32
    %21 = vector.broadcast %cst_12 : f32 to vector<4x256xf32>
    %22 = arith.mulf %21, %20 : vector<4x256xf32>
    %cst_13 = arith.constant -1.45315206 : f32
    %23 = vector.broadcast %cst_13 : f32 to vector<4x256xf32>
    %24 = arith.addf %22, %23 : vector<4x256xf32>
    %25 = arith.mulf %24, %20 : vector<4x256xf32>
    %cst_14 = arith.constant 1.42141378 : f32
    %26 = vector.broadcast %cst_14 : f32 to vector<4x256xf32>
    %27 = arith.addf %25, %26 : vector<4x256xf32>
    %28 = arith.mulf %27, %20 : vector<4x256xf32>
    %cst_15 = arith.constant -0.284496725 : f32
    %29 = vector.broadcast %cst_15 : f32 to vector<4x256xf32>
    %30 = arith.addf %28, %29 : vector<4x256xf32>
    %31 = arith.mulf %30, %20 : vector<4x256xf32>
    %cst_16 = arith.constant 0.254829586 : f32
    %32 = vector.broadcast %cst_16 : f32 to vector<4x256xf32>
    %33 = arith.addf %31, %32 : vector<4x256xf32>
    %34 = arith.mulf %33, %20 : vector<4x256xf32>
    %cst_17 = arith.constant 0.000000e+00 : f32
    %35 = vector.broadcast %cst_17 : f32 to vector<4x256xf32>
    %36 = arith.subf %35, %14 : vector<4x256xf32>
    %37 = arith.mulf %36, %14 : vector<4x256xf32>
    %38 = math.exp %37 : vector<4x256xf32>
    %39 = arith.mulf %34, %38 : vector<4x256xf32>
    %cst_18 = arith.constant 1.000000e+00 : f32
    %40 = vector.broadcast %cst_18 : f32 to vector<4x256xf32>
    %41 = arith.subf %40, %39 : vector<4x256xf32>
    %cst_19 = arith.constant 0.000000e+00 : f32
    %42 = vector.broadcast %cst_19 : f32 to vector<4x256xf32>
    %43 = arith.cmpf olt, %13, %42 : vector<4x256xf32>
    %cst_20 = arith.constant 0.000000e+00 : f32
    %44 = vector.broadcast %cst_20 : f32 to vector<4x256xf32>
    %45 = arith.subf %44, %41 : vector<4x256xf32>
    %46 = arith.select %43, %45, %41 : vector<4x256xi1>, vector<4x256xf32>
    %cst_21 = arith.constant 1.000000e+00 : f32
    %47 = vector.broadcast %cst_21 : f32 to vector<4x256xf32>
    %48 = arith.addf %47, %46 : vector<4x256xf32>
    %49 = arith.mulf %11, %48 : vector<4x256xf32>
    %c0_22 = arith.constant 0 : index
    %c0_23 = arith.constant 0 : index
    %c0_24 = arith.constant 0 : index
    %50 = vector.load %arg5[%c0_22, %c0_23, %c0_24] : memref<1x4x1xf32, #tpu.memory_space<vmem>>, vector<1x4x1xf32>
    %51 = vector.shape_cast %50 : vector<1x4x1xf32> to vector<4x1xf32>
    %cst_25 = arith.constant dense<0.000000e+00> : vector<4xf32>
    %52 = vector.multi_reduction <add>, %49, %cst_25 [1] : vector<4x256xf32> to vector<4xf32>
    %53 = vector.shape_cast %52 : vector<4xf32> to vector<4x1xf32>
    %54 = arith.addf %51, %53 : vector<4x1xf32>
    %c0_26 = arith.constant 0 : index
    %c0_27 = arith.constant 0 : index
    %c0_28 = arith.constant 0 : index
    %55 = vector.load %arg5[%c0_26, %c0_27, %c0_28] : memref<1x4x1xf32, #tpu.memory_space<vmem>>, vector<1x4x1xf32>
    %56 = vector.shape_cast %55 : vector<1x4x1xf32> to vector<4x1xf32>
    %57 = vector.shape_cast %54 : vector<4x1xf32> to vector<1x4x1xf32>
    tpu.vector_store %arg5[%c0_26, %c0_27, %c0_28], %57 {strides = array<i32>} : memref<1x4x1xf32, #tpu.memory_space<vmem>>, vector<1x4x1xf32>,
    %c0_29 = arith.constant 0 : index
    %c0_30 = arith.constant 0 : index
    %c0_31 = arith.constant 0 : index
    %58 = vector.load %arg6[%c0_29, %c0_30, %c0_31] : memref<1x4x1xf32, #tpu.memory_space<vmem>>, vector<1x4x1xf32>
    %59 = vector.shape_cast %58 : vector<1x4x1xf32> to vector<4x1xf32>
    %60 = arith.mulf %49, %49 : vector<4x256xf32>
    %cst_32 = arith.constant dense<0.000000e+00> : vector<4xf32>
    %61 = vector.multi_reduction <add>, %60, %cst_32 [1] : vector<4x256xf32> to vector<4xf32>
    %62 = vector.shape_cast %61 : vector<4xf32> to vector<4x1xf32>
    %63 = arith.addf %59, %62 : vector<4x1xf32>
    %c0_33 = arith.constant 0 : index
    %c0_34 = arith.constant 0 : index
    %c0_35 = arith.constant 0 : index
    %64 = vector.load %arg6[%c0_33, %c0_34, %c0_35] : memref<1x4x1xf32, #tpu.memory_space<vmem>>, vector<1x4x1xf32>
    %65 = vector.shape_cast %64 : vector<1x4x1xf32> to vector<4x1xf32>
    %66 = vector.shape_cast %63 : vector<4x1xf32> to vector<1x4x1xf32>
    tpu.vector_store %arg6[%c0_33, %c0_34, %c0_35], %66 {strides = array<i32>} : memref<1x4x1xf32, #tpu.memory_space<vmem>>, vector<1x4x1xf32>,
    return
  }
  func.func @transform_0(%arg0: i32, %arg1: i32) -> (i32, i32, i32) {
    %c0_i32 = arith.constant 0 : i32
    %c0_i32_0 = arith.constant 0 : i32
    return %arg0, %c0_i32, %arg1 : i32, i32, i32
  }
  func.func @transform_1(%arg0: i32, %arg1: i32) -> (i32, i32) {
    %c0_i32 = arith.constant 0 : i32
    %c0_i32_0 = arith.constant 0 : i32
    %c0_i32_1 = arith.constant 0 : i32
    return %c0_i32, %c0_i32_0 : i32, i32
  }
  func.func @transform_2(%arg0: i32, %arg1: i32) -> (i32, i32) {
    %c0_i32 = arith.constant 0 : i32
    %c0_i32_0 = arith.constant 0 : i32
    %c0_i32_1 = arith.constant 0 : i32
    return %c0_i32, %c0_i32_0 : i32, i32
  }
  func.func @transform_3(%arg0: i32, %arg1: i32) -> (i32, i32, i32) {
    %c0_i32 = arith.constant 0 : i32
    %c0_i32_0 = arith.constant 0 : i32
    %c0_i32_1 = arith.constant 0 : i32
    return %arg0, %c0_i32, %c0_i32_0 : i32, i32, i32
  }
  func.func @transform_4(%arg0: i32, %arg1: i32) -> (i32, i32, i32) {
    %c0_i32 = arith.constant 0 : i32
    %c0_i32_0 = arith.constant 0 : i32
    %c0_i32_1 = arith.constant 0 : i32
    return %arg0, %c0_i32, %c0_i32_0 : i32, i32, i32
  }
}

</mosaic_0001>

<llo_original>
// kernel: tpu_custom_call.1
$region0: #{tpu_custom_call.1}
  #allocation0 [shape = 'u32[]', space=smem, size = 0x4, offset = 0x4, fixed_abs, tag = 'smem constant byte address 0x4 - core index']
  #allocation1 [shape = 'u32[144,128]{1,0:T(1,128)}', space=vmem, size = 0x12000, scoped, tag = 'internal scratch']
  %s0 = inlined_call_operand.hbm [shape: f32[2,4,256], index: 0, kind: input, shape index: {}]
  %s1 = inlined_call_operand.vmem [shape: f32[4,4], index: 1, kind: input, shape index: {}]
  %s2 = inlined_call_operand.vmem [shape: f32[4,1], index: 2, kind: input, shape index: {}]
  %s3 = inlined_call_operand.vmem [shape: f32[2,4,1], index: 3, kind: output, shape index: {0}]
  %s4 = inlined_call_operand.vmem [shape: f32[2,4,1], index: 4, kind: output, shape index: {1}]
  %5 = xla_tuple %s3, %s4
  %s6 = sld [smem:[#allocation0]]
  $region61: #{tpu_custom_call.1} parent=0
    _
  %s8 = ssub.s32 1, %s6
  %s9 = scalar_select 0, %s8, %s6
  $region1: #{tpu_custom_call.1} parent=0
    #allocation2 [shape = 'u8[8192]{0}', space=vmem, size = 0x2000, scoped, tag = 'input window, operand 0']
    #allocation3 [shape = 's32[2]{0}', space=sflag, size = 0x8, scoped, tag = 'scoped memory for tpu_custom_call.1']
    %10 = vsyncpa [#allocation3], 0
    %s11 = scalar_lea.sflag [#allocation3], 1
    %12 = vsyncpa %s11, 0
    loop: start=0, step=1, limit=4
    $region2: #{tpu_custom_call.1} parent=1 // loop_pre_header
      _
    $region3: #{tpu_custom_call.1} parent=1 // loop_header
      %s14 = sphi 0, %s18
      %p15 = scmp.ge.s32.totalorder %s14, 4
      %s21 = sphi 0, %s33
      %s22 = sphi 0, %s29
      %s23 = sphi 0, %s21
      %s24 = sphi 0, %s22
      %s25 = sphi 0, %s23
      %s26 = sphi 0, %s24
      %s38 = sphi 0, %s40
      %s41 = sphi 0, %s38
      %s42 = sphi 0, %s41
      %s58 = sphi 0, %s42
      %s62 = sphi 0, %s62
      %s64 = sphi 0, %s62
      %s65 = sphi 0, %s64
      %s79 = sphi 0, %s65
      %s83 = sphi 0, %s83
      %s85 = sphi 0, %s83
      %s86 = sphi 0, %s85
      %s100 = sphi 0, %s86
      %s106 = sphi 0, %s108
      %s109 = sphi 0, %s106
      %s110 = sphi 0, %s109
      %s126 = sphi 0, %s110
      %s132 = sphi 0, %s134
      %s135 = sphi 0, %s132
      %s136 = sphi 0, %s135
      %s152 = sphi 0, %s136
    $region4: #{tpu_custom_call.1} parent=1 // loop_header_branch
      %17 = sbr.rel (%p15) target = $region8
    $region5: #{tpu_custom_call.1} parent=1 // loop_body
      %s19 = ssub.s32 %s14, 1
      %s20 = ssub.s32 %s14, 2
      %s27 = sadd.s32 1, %s22
      %p28 = scmp.ge.s32.totalorder %s27, 1
      %s29 = scalar_select %p28, 0, %s27
      %s30 = sadd.s32 1, %s21
      %s31 = scalar_select %p28, %s30, %s21
      %p32 = scmp.ge.s32.totalorder %s31, 2
      %s33 = scalar_select %p32, 0, %s31
      %s34 = ssub.s32 %s21, %s33
      %s35 = ssub.s32 %s22, %s29
      %s36 = sor.u32 %s34, %s35
      %p37 = scmp.eq.s32.totalorder %s36, 0
      %s39 = sadd.s32 %s38, 1
      %s40 = scalar_select %p37, %s38, %s39
      %p43 = pneg %p37
      %p44 = scmp.eq.s32.totalorder %s14, 1
      %p45 = por %p43, %p44
      %p46 = scmp.ne.s32.totalorder %s38, %s41
      %p47 = scmp.eq.s32.totalorder %s14, 0
      %p48 = por %p46, %p47
      %p49 = scmp.ne.s32.totalorder %s38, %s41
      %p50 = scmp.eq.s32.totalorder %s19, 1
      %p51 = por %p49, %p50
      %p52 = scmp.ne.s32.totalorder %s41, %s42
      %p53 = scmp.eq.s32.totalorder %s19, 0
      %p54 = por %p52, %p53
      %p55 = scmp.ne.s32.totalorder %s41, %s42
      %p56 = scmp.eq.s32.totalorder %s20, 1
      %p57 = por %p55, %p56
      %p59 = scmp.ne.s32.totalorder %s42, %s58
      %p60 = scmp.eq.s32.totalorder %s20, 0
      %p61 = por %p59, %p60
      %s63 = sadd.s32 %s62, 1
      %p66 = scmp.eq.s32.totalorder %s14, 1
      %p67 = scmp.ne.s32.totalorder %s62, %s64
      %p68 = scmp.eq.s32.totalorder %s14, 0
      %p69 = por %p67, %p68
      %p70 = scmp.ne.s32.totalorder %s62, %s64
      %p71 = scmp.eq.s32.totalorder %s19, 1
      %p72 = por %p70, %p71
      %p73 = scmp.ne.s32.totalorder %s64, %s65
      %p74 = scmp.eq.s32.totalorder %s19, 0
      %p75 = por %p73, %p74
      %p76 = scmp.ne.s32.totalorder %s64, %s65
      %p77 = scmp.eq.s32.totalorder %s20, 1
      %p78 = por %p76, %p77
      %p80 = scmp.ne.s32.totalorder %s65, %s79
      %p81 = scmp.eq.s32.totalorder %s20, 0
      %p82 = por %p80, %p81
      %s84 = sadd.s32 %s83, 1
      %p87 = scmp.eq.s32.totalorder %s14, 1
      %p88 = scmp.ne.s32.totalorder %s83, %s85
      %p89 = scmp.eq.s32.totalorder %s14, 0
      %p90 = por %p88, %p89
      %p91 = scmp.ne.s32.totalorder %s83, %s85
      %p92 = scmp.eq.s32.totalorder %s19, 1
      %p93 = por %p91, %p92
      %p94 = scmp.ne.s32.totalorder %s85, %s86
      %p95 = scmp.eq.s32.totalorder %s19, 0
      %p96 = por %p94, %p95
      %p97 = scmp.ne.s32.totalorder %s85, %s86
      %p98 = scmp.eq.s32.totalorder %s20, 1
      %p99 = por %p97, %p98
      %p101 = scmp.ne.s32.totalorder %s86, %s100
      %p102 = scmp.eq.s32.totalorder %s20, 0
      %p103 = por %p101, %p102
      %s104 = ssub.s32 %s21, %s33
      %p105 = scmp.eq.s32.totalorder %s104, 0
      %s107 = sadd.s32 %s106, 1
      %s108 = scalar_select %p105, %s106, %s107
      %p111 = pneg %p105
      %p112 = scmp.eq.s32.totalorder %s14, 1
      %p113 = por %p111, %p112
      %p114 = scmp.ne.s32.totalorder %s106, %s109
      %p115 = scmp.eq.s32.totalorder %s14, 0
      %p116 = por %p114, %p115
      %p117 = scmp.ne.s32.totalorder %s106, %s109
      %p118 = scmp.eq.s32.totalorder %s19, 1
      %p119 = por %p117, %p118
      %p120 = scmp.ne.s32.totalorder %s109, %s110
      %p121 = scmp.eq.s32.totalorder %s19, 0
      %p122 = por %p120, %p121
      %p123 = scmp.ne.s32.totalorder %s109, %s110
      %p124 = scmp.eq.s32.totalorder %s20, 1
      %p125 = por %p123, %p124
      %p127 = scmp.ne.s32.totalorder %s110, %s126
      %p128 = scmp.eq.s32.totalorder %s20, 0
      %p129 = por %p127, %p128
      %s130 = ssub.s32 %s21, %s33
      %p131 = scmp.eq.s32.totalorder %s130, 0
      %s133 = sadd.s32 %s132, 1
      %s134 = scalar_select %p131, %s132, %s133
      %p137 = pneg %p131
      %p138 = scmp.eq.s32.totalorder %s14, 1
      %p139 = por %p137, %p138
      %p140 = scmp.ne.s32.totalorder %s132, %s135
      %p141 = scmp.eq.s32.totalorder %s14, 0
      %p142 = por %p140, %p141
      %p143 = scmp.ne.s32.totalorder %s132, %s135
      %p144 = scmp.eq.s32.totalorder %s19, 1
      %p145 = por %p143, %p144
      %p146 = scmp.ne.s32.totalorder %s135, %s136
      %p147 = scmp.eq.s32.totalorder %s19, 0
      %p148 = por %p146, %p147
      %p149 = scmp.ne.s32.totalorder %s135, %s136
      %p150 = scmp.eq.s32.totalorder %s20, 1
      %p151 = por %p149, %p150
      %p153 = scmp.ne.s32.totalorder %s136, %s152
      %p154 = scmp.eq.s32.totalorder %s20, 0
      %p155 = por %p153, %p154
      %p156 = scmp.le.s32.totalorder 1, %s14
      %p157 = scmp.lt.s32.totalorder %s14, 3
      %p158 = pnand %p156, %p157
      %p159 = pneg %p158
      // Predicated region
      $region9: #{tpu_custom_call.1} parent=5 // pred_check
        _
      $region10: #{tpu_custom_call.1} parent=5 // pred_check_branch
        %161 = sbr.rel (%p158) target = $region12
      $region11: #{tpu_custom_call.1} parent=5 // pred_region
        %s162 = ssub.s32 %s14, 1
        // Predicated region
        $region13: #{tpu_custom_call.1} parent=11 // pred_check
          %p163 = pneg %p75
        $region14: #{tpu_custom_call.1} parent=11 // pred_check_branch
          %165 = sbr.rel (%p163) target = $region16
        $region15: #{tpu_custom_call.1} parent=11 // pred_region
          _
        $region16: #{tpu_custom_call.1} parent=11 // pred_fallthru
          _
        // Predicated region
        $region17: #{tpu_custom_call.1} parent=11 // pred_check
          %p166 = pneg %p96
        $region18: #{tpu_custom_call.1} parent=11 // pred_check_branch
          %168 = sbr.rel (%p166) target = $region20
        $region19: #{tpu_custom_call.1} parent=11 // pred_region
          _
        $region20: #{tpu_custom_call.1} parent=11 // pred_fallthru
          _
      $region12: #{tpu_custom_call.1} parent=5 // pred_fallthru
        _
      %p169 = scmp.lt.s32.totalorder %s14, 2
      // Predicated region
      $region21: #{tpu_custom_call.1} parent=5 // pred_check
        %p170 = pneg %p169
      $region22: #{tpu_custom_call.1} parent=5 // pred_check_branch
        %172 = sbr.rel (%p170) target = $region24
      $region23: #{tpu_custom_call.1} parent=5 // pred_region
        // Predicated region
        $region25: #{tpu_custom_call.1} parent=23 // pred_check
          %p173 = pneg %p48
        $region26: #{tpu_custom_call.1} parent=23 // pred_check_branch
          %175 = sbr.rel (%p173) target = $region28
        $region27: #{tpu_custom_call.1} parent=23 // pred_region
          %s176 = sand.u32 %s38, 1
          %s177 = scalar_lea.sflag [#allocation3], %s176
          %s178 = sand.u32 %s38, 1
          %s179 = smul.addr %s178, 8
          %s180 = scalar_lea.vmem [#allocation2], %s179
          %s181 = smul.u32 2, %s22
          %s183 = ssub.s32 128, 128
          %184 = vsyncadd %s177, %s183
          %s185 = smul.addr %s21, 2
          %s186 = sadd.s32 %s181, %s185
          %s187 = smul.addr %s186, 64
          %s188 = scalar_lea.hbm %s0, %s187
          %s190 = sshll.u32 %s180, 4
          %s191 = int_to_ptr.vmem [resolvable:$true] %s190
          %193 = dma.hbm_to_vmem [thread:$0]  %s188, 128, %s191, %s177
        $region28: #{tpu_custom_call.1} parent=23 // pred_fallthru
          _
      $region24: #{tpu_custom_call.1} parent=5 // pred_fallthru
        _
      %p194 = scmp.le.s32.totalorder 1, %s14
      %p195 = scmp.lt.s32.totalorder %s14, 3
      %p196 = pnand %p194, %p195
      %p197 = pneg %p196
      // Predicated region
      $region29: #{tpu_custom_call.1} parent=5 // pred_check
        _
      $region30: #{tpu_custom_call.1} parent=5 // pred_check_branch
        %199 = sbr.rel (%p196) target = $region32
      $region31: #{tpu_custom_call.1} parent=5 // pred_region
        %s200 = ssub.s32 %s14, 1
        %s201 = sand.u32 %s41, 1
        %s202 = scalar_lea.sflag [#allocation3], %s201
        %s203 = sand.u32 %s41, 1
        %s204 = smul.addr %s203, 8
        %s205 = scalar_lea.vmem [#allocation2], %s204
        // Predicated region
        $region33: #{tpu_custom_call.1} parent=31 // pred_check
          %p206 = pneg %p54
        $region34: #{tpu_custom_call.1} parent=31 // pred_check_branch
          %208 = sbr.rel (%p206) target = $region36
        $region35: #{tpu_custom_call.1} parent=31 // pred_region
          %209 = dma.done %s202, 128
        $region36: #{tpu_custom_call.1} parent=31 // pred_fallthru
          _
        %s210 = sand.u32 %s41, 1
        %s211 = scalar_lea.sflag [#allocation3], %s210
        %s212 = sand.u32 %s41, 1
        %s213 = smul.addr %s212, 8
        %s214 = scalar_lea.vmem [#allocation2], %s213
        %p215 = pneg %p54
        %p216 = pneg %p51
        %p217 = pneg %p75
        %p218 = pneg %p72
        %p219 = pneg %p96
        %p220 = pneg %p93
        %p221 = pneg %p122
        %p222 = pneg %p119
        %p223 = scmp.lt.s32.totalorder %s23, 1
        %s224 = scalar_select %p223, %s23, 1
        %s225 = smul.addr %s224, 4
        %s226 = scalar_lea.vmem %s3, %s225
        %p227 = pneg %p148
        %p228 = pneg %p145
        %p229 = scmp.lt.s32.totalorder %s23, 1
        %s230 = scalar_select %p229, %s23, 1
        %s231 = smul.addr %s230, 4
        %s232 = scalar_lea.vmem %s4, %s231
        %s233 = smul.u32 2, %s24
        %p234 = scmp.lt.s32.totalorder %s23, 1
        %s235 = scalar_select %p234, %s23, 1
        %s236 = smul.addr %s235, 4
        %s237 = scalar_lea.vmem %s3, %s236
        %p238 = scmp.lt.s32.totalorder %s23, 1
        %s239 = scalar_select %p238, %s23, 1
        %s240 = smul.addr %s239, 4
        %s241 = scalar_lea.vmem %s4, %s240
        %p242 = scmp.eq.s32.totalorder %s24, 0
        // Predicated region
        $region37: #{tpu_custom_call.1} parent=31 // pred_check
          %p243 = pneg %p242
        $region38: #{tpu_custom_call.1} parent=31 // pred_check_branch
          %245 = sbr.rel (%p243) target = $region40
        $region39: #{tpu_custom_call.1} parent=31 // pred_region
          %vm246 = vcmask 3072
          %247 = vst.msk [vmem:[%s237] sm:$0xf] %vm246, 0.0
          %248 = vst.msk [vmem:[%s241] sm:$0xf] %vm246, 0.0
        $region40: #{tpu_custom_call.1} parent=31 // pred_fallthru
          _
        %v249 = vld [vmem:[%s205] sm:$0xff]
        %v250 = vld [vmem:[%s1] sm:$0xf]
        %v251 = vld [vmem:[%s2] sm:$0xf]
        %253 = vset.pattern.permute.xlu0 0
        %254 = vperm.xlu0 %253, %v251
        %v255 = vpop.permute.xlu0 %254
        %v258 = vcombine.high %v249, %v249
        %vm259 = vcmask 31744
        %v261 = vsel %vm259, %v250, 0
        %vm263 = vcmask 1043456
        %v264 = vsel %vm263, %v249, 0
        %v266 = vsel %vm263, %v258, 0
        %268 = vmatprep.subr.mxu0 0.0
        %269 = vmatpush1.msra.mxu0 0.0
        %270 = vmatprep.subr.mxu0 0.0
        %271 = vmatpush1.msra.mxu0 0.0
        %272 = vmatprep.subr.mxu0 0.0
        %273 = vmatpush1.msra.mxu0 0.0
        %274 = vmatprep.subr.mxu0 0.0
        %275 = vmatpush1.msra.mxu0 0.0
        %276 = vmatprep.subr.mxu0 0.0
        %277 = vmatpush1.msra.mxu0 0.0
        %278 = vmatprep.subr.mxu0 0.0
        %279 = vmatpush1.msra.mxu0 0.0
        %280 = vmatprep.subr.mxu0 0.0
        %281 = vmatpush1.msra.mxu0 0.0
        %282 = vmatprep.subr.mxu0 0.0
        %283 = vmatpush1.msra.mxu0 0.0
        %284 = vmatprep.subr.mxu0 0.0
        %285 = vmatpush1.msra.mxu0 0.0
        %286 = vmatprep.subr.mxu0 0.0
        %287 = vmatpush1.msra.mxu0 0.0
        %288 = vmatprep.subr.mxu0 0.0
        %289 = vmatpush1.msra.mxu0 0.0
        %290 = vmatprep.subr.mxu0 0.0
        %291 = vmatpush1.msra.mxu0 0.0
        %292 = vmatprep.subr.mxu0 0.0
        %293 = vmatpush1.msra.mxu0 0.0
        %294 = vmatprep.subr.mxu0 0.0
        %295 = vmatpush1.msra.mxu0 0.0
        %296 = vmatprep.subr.mxu0 0.0
        %297 = vmatpush1.msra.mxu0 0.0
        %298 = vmatprep.subr.mxu0 %v266
        %299 = vmatpush1.msra.mxu0 %v264
        %300 = vmatprep.subr.mxu0 0.0
        %301 = vmatpush2.msra.mxu0 0.0
        %302 = vmatprep.subr.mxu0 0.0
        %303 = vmatpush2.msra.mxu0 0.0
        %304 = vmatprep.subr.mxu0 0.0
        %305 = vmatpush2.msra.mxu0 0.0
        %306 = vmatprep.subr.mxu0 0.0
        %307 = vmatpush2.msra.mxu0 0.0
        %308 = vmatprep.subr.mxu0 0.0
        %309 = vmatpush2.msra.mxu0 0.0
        %310 = vmatprep.subr.mxu0 0.0
        %311 = vmatpush2.msra.mxu0 0.0
        %312 = vmatprep.subr.mxu0 0.0
        %313 = vmatpush2.msra.mxu0 0.0
        %314 = vmatprep.subr.mxu0 0.0
        %315 = vmatpush2.msra.mxu0 0.0
        %316 = vmatprep.subr.mxu0 0.0
        %317 = vmatpush2.msra.mxu0 0.0
        %318 = vmatprep.subr.mxu0 0.0
        %319 = vmatpush2.msra.mxu0 0.0
        %320 = vmatprep.subr.mxu0 0.0
        %321 = vmatpush2.msra.mxu0 0.0
        %322 = vmatprep.subr.mxu0 0.0
        %323 = vmatpush2.msra.mxu0 0.0
        %324 = vmatprep.subr.mxu0 0.0
        %325 = vmatpush2.msra.mxu0 0.0
        %326 = vmatprep.subr.mxu0 0.0
        %327 = vmatpush2.msra.mxu0 0.0
        %328 = vmatprep.subr.mxu0 0.0
        %329 = vmatpush2.msra.mxu0 0.0
        %330 = vmatprep.subr.mxu0 0.0
        %331 = vmatpush2.msra.mxu0 0.0
        %332 = vmatprep.mubr.f32.mxu0 0.0
        %333 = vmatmul.mubr.f32.gmra.mxu0 %v261
        %v334 = vpop.f32.mrf.mxu0
        %v335 = vadd.f32 %v255, %v334
        %v336 = vpop.f32.mrf.mxu0
        %v337 = vadd.f32 %v255, %v336
        %338 = vdwg.mxu0
        %v339 = vmul.f32 %v335, 0.5
        %v340 = vmul.f32 %v337, 0.5
        %v341 = vmul.f32 %v335, 0.70710677
        %v342 = vmul.f32 %v337, 0.70710677
        %v343 = vand.u32 2147483647, %v341
        %v344 = vand.u32 2147483647, %v342
        %v345 = vmul.f32 %v343, 0.3275911
        %v346 = vmul.f32 %v344, 0.3275911
        %v347 = vadd.f32 %v345, 1.0
        %v348 = vadd.f32 %v346, 1.0
        %v349 = vrcp.pop %v347
        %v350 = vmul.f32 1.0, %v349
        %v351 = vrcp.pop %v348
        %v352 = vmul.f32 1.0, %v351
        %v353 = vmul.f32 %v350, 1.0614054
        %v354 = vmul.f32 %v352, 1.0614054
        %v355 = vadd.f32 %v353, -1.4531521
        %v356 = vadd.f32 %v354, -1.4531521
        %v357 = vmul.f32 %v355, %v350
        %v358 = vmul.f32 %v356, %v352
        %v359 = vadd.f32 %v357, 1.4214138
        %v360 = vadd.f32 %v358, 1.4214138
        %v361 = vmul.f32 %v359, %v350
        %v362 = vmul.f32 %v360, %v352
        %v363 = vadd.f32 %v361, -0.28449672
        %v364 = vadd.f32 %v362, -0.28449672
        %v365 = vmul.f32 %v363, %v350
        %v366 = vmul.f32 %v364, %v352
        %v367 = vadd.f32 %v365, 0.2548296
        %v368 = vadd.f32 %v366, 0.2548296
        %v369 = vmul.f32 %v367, %v350
        %v370 = vmul.f32 %v368, %v352
        %v371 = vsub.f32 0.0, %v343
        %v372 = vsub.f32 0.0, %v344
        %v373 = vmul.f32 %v371, %v343
        %v374 = vmul.f32 %v372, %v344
        %v375 = vmul.f32 %v373, 1.442695
        %v376 = vpow.pop %v375
        %v377 = vmul.f32 %v374, 1.442695
        %v378 = vpow.pop %v377
        %v379 = vmul.f32 %v369, %v376
        %v380 = vmul.f32 %v370, %v378
        %v381 = vsub.f32 1.0, %v379
        %v382 = vsub.f32 1.0, %v380
        %vm383 = vcmp.lt.f32.partialorder %v341, 0.0
        %vm384 = vcmp.lt.f32.partialorder %v342, 0.0
        %v385 = vsub.f32 0.0, %v381
        %v386 = vsub.f32 0.0, %v382
        %v387 = vsel %vm383, %v385, %v381
        %v388 = vsel %vm384, %v386, %v382
        %v389 = vadd.f32 %v387, 1.0
        %v390 = vadd.f32 %v388, 1.0
        %v391 = vmul.f32 %v339, %v389
        %v392 = vmul.f32 %v340, %v390
        %v393 = vld [vmem:[%s237] sm:$0xf]
        %v394 = vsel %vm263, %v391, 0.0
        %v395 = vsel %vm263, %v392, 0.0
        %v396 = vadd.f32 %v394, %v395
        %397 = vadd.xlane.f32.xlu0 %v396
        %v398 = vpop.xlane.xlu0 %397
        %v399 = vadd.f32 %v393, %v398
        %vm400 = vcmask 3072
        %401 = vst.msk [vmem:[%s237] sm:$0xf] %vm400, %v399
        %v402 = vld [vmem:[%s241] sm:$0xf]
        %v403 = vmul.f32 %v391, %v391
        %v404 = vmul.f32 %v392, %v392
        %v405 = vsel %vm263, %v403, 0.0
        %v406 = vsel %vm263, %v404, 0.0
        %v407 = vadd.f32 %v405, %v406
        %408 = vadd.xlane.f32.xlu0 %v407
        %v409 = vpop.xlane.xlu0 %408
        %v410 = vadd.f32 %v402, %v409
        %411 = vst.msk [vmem:[%s241] sm:$0xf] %vm400, %v410
        %p412 = scmp.lt.s32.totalorder %s23, 1
        %s413 = scalar_select %p412, %s23, 1
        %s414 = smul.addr %s413, 4
        %s415 = scalar_lea.vmem %s3, %s414
        %p416 = scmp.lt.s32.totalorder %s23, 1
        %s417 = scalar_select %p416, %s23, 1
        %s418 = smul.addr %s417, 4
        %s419 = scalar_lea.vmem %s4, %s418
        // Predicated region
        $region41: #{tpu_custom_call.1} parent=31 // pred_check
          %p420 = pneg %p119
        $region42: #{tpu_custom_call.1} parent=31 // pred_check_branch
          %422 = sbr.rel (%p420) target = $region44
        $region43: #{tpu_custom_call.1} parent=31 // pred_region
          _
        $region44: #{tpu_custom_call.1} parent=31 // pred_fallthru
          _
        // Predicated region
        $region45: #{tpu_custom_call.1} parent=31 // pred_check
          %p423 = pneg %p145
        $region46: #{tpu_custom_call.1} parent=31 // pred_check_branch
          %425 = sbr.rel (%p423) target = $region48
        $region47: #{tpu_custom_call.1} parent=31 // pred_region
          _
        $region48: #{tpu_custom_call.1} parent=31 // pred_fallthru
          _
      $region32: #{tpu_custom_call.1} parent=5 // pred_fallthru
        _
      %p426 = scmp.le.s32.totalorder 2, %s14
      // Predicated region
      $region49: #{tpu_custom_call.1} parent=5 // pred_check
        %p427 = pneg %p426
      $region50: #{tpu_custom_call.1} parent=5 // pred_check_branch
        %429 = sbr.rel (%p427) target = $region52
      $region51: #{tpu_custom_call.1} parent=5 // pred_region
        %s430 = ssub.s32 %s14, 2
        // Predicated region
        $region53: #{tpu_custom_call.1} parent=51 // pred_check
          %p431 = pneg %p125
        $region54: #{tpu_custom_call.1} parent=51 // pred_check_branch
          %433 = sbr.rel (%p431) target = $region56
        $region55: #{tpu_custom_call.1} parent=51 // pred_region
          %p434 = scmp.lt.s32.totalorder %s25, 1
          %s435 = scalar_select %p434, %s25, 1
          %s436 = smul.addr %s435, 4
          %s437 = scalar_lea.vmem %s3, %s436
        $region56: #{tpu_custom_call.1} parent=51 // pred_fallthru
          _
        // Predicated region
        $region57: #{tpu_custom_call.1} parent=51 // pred_check
          %p438 = pneg %p151
        $region58: #{tpu_custom_call.1} parent=51 // pred_check_branch
          %440 = sbr.rel (%p438) target = $region60
        $region59: #{tpu_custom_call.1} parent=51 // pred_region
          %p441 = scmp.lt.s32.totalorder %s25, 1
          %s442 = scalar_select %p441, %s25, 1
          %s443 = smul.addr %s442, 4
          %s444 = scalar_lea.vmem %s4, %s443
        $region60: #{tpu_custom_call.1} parent=51 // pred_fallthru
          _
      $region52: #{tpu_custom_call.1} parent=5 // pred_fallthru
        _
    $region6: #{tpu_custom_call.1} parent=1 // loop_footer
      %s18 = sadd.s32 1, %s14
    $region7: #{tpu_custom_call.1} parent=1 // loop_footer_branch
      %13 = sbr.rel target = $region3
    $region8: #{tpu_custom_call.1} parent=1 // loop_exit
      _
    %445 = vsyncpa [#allocation3], 1
    %s446 = scalar_lea.sflag [#allocation3], 1
    %447 = vsyncpa %s446, 1

</llo_original>
